<compile_context>
chip_gen: v7x
topology: tpu7x:2x2x1
jax: 0.10.0
libtpu: 0.0.40
codegen_flags: <defaults>
</compile_context>

<pallas_src>
import functools

import jax
import jax.numpy as jnp
from jax.experimental import pallas as pl
from jax.experimental.pallas import tpu as pltpu


# ---------------------------------------------------------------------------
# One-time, per-backend calibration of pltpu.roll's rotation direction
# (expected to match jnp.roll: out[i] = x[i - shift]).  Keyed by backend so a
# cached orientation can never disagree with the compiled target.
_ROLL_LIKE_JNP = {}


def _roll_matches_jnp():
    backend = jax.default_backend()
    if backend not in _ROLL_LIKE_JNP:
        def probe(x_ref, o_ref):
            o_ref[...] = pltpu.roll(x_ref[...], shift=1, axis=1)

        x = jnp.arange(8 * 128, dtype=jnp.float32).reshape(8, 128)
        y = pl.pallas_call(
            probe, out_shape=jax.ShapeDtypeStruct((8, 128), jnp.float32))(x)
        _ROLL_LIKE_JNP[backend] = bool(y[0, 1] == x[0, 0])
    return _ROLL_LIKE_JNP[backend]


# ---------------------------------------------------------------------------
def _conv_softmax_kernel(w1_ref, w2_ref, x1_ref, x2_ref, x3_ref, o_ref,
                         *, C, H, W, ST, roll_like_jnp):
    """One grid step = a (1, C, TA, H*W) block == TA flattened sub-images.

    Processed ST sub-images (rows) at a time so every intermediate
    (inputs, hidden, accumulators, masks) stays vreg-resident.
    """
    HW = H * W
    f32 = jnp.float32
    TA = x1_ref.shape[2]
    n_sub = TA // ST

    # --- 4 edge-validity masks (lane-only; shared by every row/sub-tile) ----
    lane = jax.lax.broadcasted_iota(jnp.int32, (ST, HW), 1)
    col = (lane & (W - 1)) if (W & (W - 1)) == 0 else (lane % W)
    m_top = lane >= W                 # source row-1 inside the image
    m_bot = lane < (H - 1) * W        # source row+1 inside the image
    m_lft = col >= 1                  # source col-1 inside the image
    m_rgt = col < (W - 1)             # source col+1 inside the image

    def tap_mask(dy, dx):
        rm = m_top if dy == -1 else (m_bot if dy == 1 else None)
        cm = m_lft if dx == -1 else (m_rgt if dx == 1 else None)
        if rm is None:
            return cm
        if cm is None:
            return rm
        return rm & cm                 # corner taps: AND on the fly

    def shift(x, dy, dx):
        # y[a, (r, c)] = x[a, (r + dy, c + dx)]; wrapped-in values get masked.
        k = dy * W + dx
        if k == 0:
            return x
        amount = (-k) % HW if roll_like_jnp else k % HW
        return pltpu.roll(x, shift=amount, axis=1)

    def conv3x3(chans, w_ref, c_in, c_out):
        # chans: c_in arrays of (ST, HW); w_ref: SMEM (9*c_in*c_out,) in
        # flattened HWIO [ky, kx, ci, co] order.  Pure VPU broadcast-FMAs
        # with SMEM scalar weights; one border mask per (tap, out channel).
        acc = [jnp.zeros((ST, HW), f32) for _ in range(c_out)]
        for ky in range(3):
            for kx in range(3):
                dy, dx = ky - 1, kx - 1
                rolled = [shift(chans[ci], dy, dx) for ci in range(c_in)]
                m = tap_mask(dy, dx)
                base = (ky * 3 + kx) * c_in
                for co in range(c_out):
                    part = rolled[0] * w_ref[base * c_out + co]
                    for ci in range(1, c_in):
                        part = part + rolled[ci] * w_ref[(base + ci) * c_out + co]
                    if m is not None:
                        part = jnp.where(m, part, 0.0)
                    acc[co] = acc[co] + part
        return acc

    def process(r0):
        rows = pl.ds(r0, ST)
        x1c = [x1_ref[0, ci, rows, :].astype(f32) for ci in range(C)]

        # conv1: C -> C, 3x3 "same", no bias, then ReLU.
        hidden = [jnp.maximum(t, 0.0) for t in conv3x3(x1c, w1_ref, C, C)]

        # conv2: C -> 2, 3x3 "same", no bias.
        a0, a1 = conv3x3(hidden, w2_ref, C, 2)

        # 2-way channel softmax == sigmoid of the logit difference (exact).
        p0 = 1.0 / (1.0 + jnp.exp(a1 - a0))
        p1 = 1.0 - p0

        # Weighted blend; lane-dense 256-wide stores.
        for co in range(C):
            x2c = x2_ref[0, co, rows, :].astype(f32)
            x3c = x3_ref[0, co, rows, :].astype(f32)
            o_ref[0, co, rows, :] = (p0 * x2c + p1 * x3c).astype(o_ref.dtype)

    if n_sub == 1:
        process(0)
    else:
        def body(s, carry):
            process(pl.multiple_of(s * ST, ST))
            return carry
        jax.lax.fori_loop(0, n_sub, body, 0)


# ---------------------------------------------------------------------------
def conv_softmax_pallas(x1, x2, x3, w1_hwio, w2_hwio, ta_max=128):
    """x1, x2, x3: (b, c, ah, aw, h, w) exactly like the PyTorch module.
    w1_hwio: (3, 3, c, c), w2_hwio: (3, 3, c, 2) -- Conv2d weights in HWIO."""
    b, c, ah, aw, h, w = x1.shape
    A = ah * aw
    HW = h * w

    # Free, contiguous reshapes -- no transpose, no pad, no extra HBM passes.
    x1r = x1.reshape(b, c, A, HW)
    x2r = x2.reshape(b, c, A, HW)
    x3r = x3.reshape(b, c, A, HW)

    # Sub-image tile (second-to-last block dim): as large as feasible; must be
    # a multiple of 8 or the full axis extent (layout rule).
    if A <= ta_max:
        TA = A
    else:
        TA = max(8, ta_max - ta_max % 8)
        for cand in range(TA, 7, -8):           # prefer an exact divisor of A
            if A % cand == 0:
                TA = cand
                break
        # (If no divisor exists, the ragged last block is handled by Pallas'
        #  out-of-bounds read padding / dropped stores.)
    grid = (b, pl.cdiv(A, TA))

    # In-kernel sub-tile: 8 sub-images (rows) per vreg-resident pass.
    ST = 8 if TA % 8 == 0 else TA

    # Tiny conv weights live in SMEM and are read as scalars per FMA.
    w1_flat = jnp.asarray(w1_hwio, jnp.float32).reshape(-1)   # (9*c*c,)
    w2_flat = jnp.asarray(w2_hwio, jnp.float32).reshape(-1)   # (9*c*2,)

    kernel = functools.partial(
        _conv_softmax_kernel, C=c, H=h, W=w, ST=ST,
        roll_like_jnp=_roll_matches_jnp())

    blk = (1, c, TA, HW)
    idx = lambda bi, ai: (bi, 0, ai, 0)

    out = pl.pallas_call(
        kernel,
        out_shape=jax.ShapeDtypeStruct((b, c, A, HW), x2.dtype),
        grid_spec=pltpu.PrefetchScalarGridSpec(
            num_scalar_prefetch=0,
            grid=grid,
            in_specs=[
                pl.BlockSpec(memory_space=pltpu.MemorySpace.SMEM),  # w1_flat
                pl.BlockSpec(memory_space=pltpu.MemorySpace.SMEM),  # w2_flat
                pl.BlockSpec(blk, idx),                             # x1
                pl.BlockSpec(blk, idx),                             # x2
                pl.BlockSpec(blk, idx),                             # x3
            ],
            out_specs=pl.BlockSpec(blk, idx),
        ),
        compiler_params=pltpu.CompilerParams(
            dimension_semantics=("parallel", "parallel")),
    )(w1_flat, w2_flat, x1r, x2r, x3r)

    # Free reshape back: (b, c, ah*aw, h*w) -> (b, c, ah, aw, h, w).
    return out.reshape(b, c, ah, aw, h, w)


# ---------------------------------------------------------------------------
def ref_forward(x1, x2, x3, w1_oihw, w2_oihw):
    """Pure-JAX reference mirroring the PyTorch forward (NCHW convs)."""
    b, c, ah, aw, h, w = x1.shape

    def r(x):  # 'b c ah aw h w -> (b ah aw) c h w'
        return x.transpose(0, 2, 3, 1, 4, 5).reshape(b * ah * aw, c, h, w)

    X1, X2, X3 = r(x1), r(x2), r(x3)
    hid = jax.lax.conv_general_dilated(
        X1, w1_oihw, (1, 1), 'SAME',
        dimension_numbers=('NCHW', 'OIHW', 'NCHW'),
        precision=jax.lax.Precision.HIGHEST)
    hid = jnp.maximum(hid, 0.0)
    att = jax.lax.conv_general_dilated(
        hid, w2_oihw, (1, 1), 'SAME',
        dimension_numbers=('NCHW', 'OIHW', 'NCHW'),
        precision=jax.lax.Precision.HIGHEST)
    att = jax.nn.softmax(att, axis=1)
    out = att[:, 0:1] * X2 + att[:, 1:2] * X3
    return out.reshape(b, ah, aw, c, h, w).transpose(0, 3, 1, 2, 4, 5)


if __name__ == "__main__":
    b, c, ah, aw, h, w = 2, 4, 2, 2, 16, 16
    key = jax.random.PRNGKey(0)
    k1, k2, k3, kw1, kw2 = jax.random.split(key, 5)

    x1 = jax.random.normal(k1, (b, c, ah, aw, h, w), jnp.float32)
    x2 = jax.random.normal(k2, (b, c, ah, aw, h, w), jnp.float32)
    x3 = jax.random.normal(k3, (b, c, ah, aw, h, w), jnp.float32)

    # Deterministic synthetic Conv2d weights (PyTorch OIHW shapes, bias=False).
    w1_oihw = 0.2 * jax.random.normal(kw1, (c, c, 3, 3), jnp.float32)
    w2_oihw = 0.2 * jax.random.normal(kw2, (2, c, 3, 3), jnp.float32)
    w1_hwio = jnp.transpose(w1_oihw, (2, 3, 1, 0))   # (3, 3, Cin, Cout=c)
    w2_hwio = jnp.transpose(w2_oihw, (2, 3, 1, 0))   # (3, 3, Cin, Cout=2)

    out = conv_softmax_pallas(x1, x2, x3, w1_hwio, w2_hwio)
    out = jax.block_until_ready(out)

    ref = ref_forward(x1, x2, x3, w1_oihw, w2_oihw)
    assert out.shape == (b, c, ah, aw, h, w)
    assert jnp.allclose(out, ref, atol=2e-3, rtol=2e-3), \
        float(jnp.max(jnp.abs(out - ref)))
    print("KERNEL_OK")
</pallas_src>

<mosaic_0001>
module attributes {stable_mosaic.version = 11 : i64} {
  func.func @probe(%arg0: memref<8x128xf32, #tpu.memory_space<vmem>>, %arg1: memref<8x128xf32, #tpu.memory_space<vmem>>) attributes {dimension_semantics = [], scalar_prefetch = 0 : i64, scratch_operands = 0 : i64, tpu.core_type = #tpu.core_type<tc>} {
    %c0 = arith.constant 0 : index
    %c0_0 = arith.constant 0 : index
    %0 = vector.load %arg0[%c0, %c0_0] : memref<8x128xf32, #tpu.memory_space<vmem>>, vector<8x128xf32>
    %c1_i32 = arith.constant 1 : i32
    %1 = tpu.dynamic_rotate %0 by %c1_i32 dim 1 : vector<8x128xf32>, i32 -> vector<8x128xf32>
    %c0_1 = arith.constant 0 : index
    %c0_2 = arith.constant 0 : index
    %2 = vector.load %arg1[%c0_1, %c0_2] : memref<8x128xf32, #tpu.memory_space<vmem>>, vector<8x128xf32>
    tpu.vector_store %arg1[%c0_1, %c0_2], %1 {strides = array<i32>} : memref<8x128xf32, #tpu.memory_space<vmem>>, vector<8x128xf32>,
    return
  }
}

</mosaic_0001>

<llo_original>
// kernel: tpu_custom_call.1
$region0: #{tpu_custom_call.1}
  #allocation0 [shape = 'u32[]', space=smem, size = 0x4, offset = 0x4, fixed_abs, tag = 'smem constant byte address 0x4 - core index']
  #allocation1 [shape = 'u32[144,128]{1,0:T(1,128)}', space=vmem, size = 0x12000, scoped, tag = 'internal scratch']
  %s0 = inlined_call_operand.hbm [shape: f32[8,128], index: 0, kind: input, shape index: {}]
  %s1 = inlined_call_operand.hbm [shape: f32[8,128], index: 1, kind: output, shape index: {}]
  %s2 = sld [smem:[#allocation0]]
  $region18: #{tpu_custom_call.1} parent=0
    _
  %s4 = ssub.s32 1, %s2
  %s5 = scalar_select 0, %s4, %s2
  $region1: #{tpu_custom_call.1} parent=0
    #allocation2 [shape = 'u8[4096]{0}', space=vmem, size = 0x1000, scoped, tag = 'input window, operand 0, single buffered']
    #allocation3 [shape = 's32[1]{0}', space=sflag, size = 0x4, scoped, tag = 'scoped memory for tpu_custom_call.1']
    #allocation4 [shape = 's32[1]{0}', space=sflag, size = 0x4, scoped, tag = 'scoped memory for tpu_custom_call.1']
    #allocation5 [shape = 'u8[4096]{0}', space=vmem, size = 0x1000, scoped, tag = 'output window, operand 0, single buffered']
    %6 = vsyncpa [#allocation3], 0
    %7 = vsyncpa [#allocation4], 0
    // Predicated region
    $region2: #{tpu_custom_call.1} parent=1 // pred_check
      _
    $region3: #{tpu_custom_call.1} parent=1 // pred_check_branch
      %9 = sbr.rel (0) target = $region5
    $region4: #{tpu_custom_call.1} parent=1 // pred_region
      %s11 = ssub.s32 128, 128
      %12 = vsyncadd [#allocation3], %s11
      %s14 = sshll.u32 [#allocation2], 4
      %s15 = int_to_ptr.vmem [resolvable:$true] %s14
      %17 = dma.hbm_to_vmem [thread:$0]  %s0, 128, %s15, [#allocation3]
    $region5: #{tpu_custom_call.1} parent=1 // pred_fallthru
      _
    // Predicated region
    $region6: #{tpu_custom_call.1} parent=1 // pred_check
      _
    $region7: #{tpu_custom_call.1} parent=1 // pred_check_branch
      %19 = sbr.rel (0) target = $region9
    $region8: #{tpu_custom_call.1} parent=1 // pred_region
      %20 = dma.done [#allocation3], 128
    $region9: #{tpu_custom_call.1} parent=1 // pred_fallthru
      _
    %v21 = vld [vmem:[#allocation2] sm:$0xff]
    %22 = vrot.lane.b32.xlu0 %v21, 1
    %v23 = vpop.permute.xlu0 %22
    %24 = vst [vmem:[#allocation5] sm:$0xff] %v23
    // Predicated region
    $region10: #{tpu_custom_call.1} parent=1 // pred_check
      _
    $region11: #{tpu_custom_call.1} parent=1 // pred_check_branch
      %26 = sbr.rel (0) target = $region13
    $region12: #{tpu_custom_call.1} parent=1 // pred_region
      %s28 = ssub.s32 128, 128
      %29 = vsyncadd [#allocation4], %s28
      %s31 = sshll.u32 [#allocation5], 4
      %s32 = int_to_ptr.vmem [resolvable:$true] %s31
      %34 = dma.vmem_to_hbm [thread:$0]  %s32, 128, %s1, [#allocation4]
    $region13: #{tpu_custom_call.1} parent=1 // pred_fallthru
      _
    // Predicated region
    $region14: #{tpu_custom_call.1} parent=1 // pred_check
      _
    $region15: #{tpu_custom_call.1} parent=1 // pred_check_branch
      %36 = sbr.rel (0) target = $region17
    $region16: #{tpu_custom_call.1} parent=1 // pred_region
      %37 = dma.done [#allocation4], 128
    $region17: #{tpu_custom_call.1} parent=1 // pred_fallthru
      _
    %38 = vsyncpa [#allocation3], 1
    %39 = vsyncpa [#allocation4], 1

</llo_original>
